<compile_context>
chip_gen: v5e
topology: v5e:2x2
jax: 0.10.0
libtpu: 0.0.40
codegen_flags: <defaults>
</compile_context>

<pallas_src>
import functools

import jax
import jax.numpy as jnp
from jax.experimental import pallas as pl
from jax.experimental.pallas import tpu as pltpu


_LANES = 128        # minor dim of the lane-dense slab (aligned path).  For a
                    # contiguous row-major slab the chunk DMA is one contiguous
                    # stretch regardless of the (rows, lanes) split, so 128 is
                    # enough; it just maximises row granularity for chunking.
_DMA_RING = 4       # max number of in-flight HBM->HBM DMA chunks


def identity(x: jax.Array) -> jax.Array:
    """True nn.Identity forward pass: zero HBM traffic, just return the input."""
    return x


def _whole_copy_kernel(x_hbm, o_hbm, sem):
    """Single DMA of the entire tensor (any rank / any size)."""
    cp = pltpu.make_async_copy(x_hbm, o_hbm, sem.at[0])
    cp.start()
    cp.wait()


def _make_ring_copy_kernel(chunk_rows: int, num_full: int, rem: int, depth: int):
    """Build a kernel that copies a (rows, _LANES) HBM slab to another HBM slab
    using `depth` concurrently in-flight DMA chunks of `chunk_rows` rows each,
    plus one static-size tail chunk of `rem` rows."""

    def kernel(x_hbm, o_hbm, sems):
        def chunk_copy(c, slot):
            start = c * chunk_rows
            return pltpu.make_async_copy(
                x_hbm.at[pl.ds(start, chunk_rows), :],
                o_hbm.at[pl.ds(start, chunk_rows), :],
                sems.at[slot],
            )

        # Prime the ring (static Python loop, at most `depth` iterations).
        for d in range(min(depth, num_full)):
            chunk_copy(d, d).start()

        @pl.loop(0, num_full)
        def _(c):
            slot = c % depth
            # Retire chunk c ...
            chunk_copy(c, slot).wait()
            nxt = c + depth

            # ... then reuse its semaphore slot for the next chunk.
            @pl.when(nxt < num_full)
            def _():
                chunk_copy(nxt, nxt % depth).start()

        # Tail chunk (static size); every ring semaphore is idle by now.
        if rem:
            base = num_full * chunk_rows
            tail = pltpu.make_async_copy(
                x_hbm.at[pl.ds(base, rem), :],
                o_hbm.at[pl.ds(base, rem), :],
                sems.at[0],
            )
            tail.start()
            tail.wait()

    return kernel


def identity_pallas(
    x: jax.Array,
    *,
    target_chunk_bytes: int = 8 * 1024 * 1024,
    in_place: bool = False,
) -> jax.Array:
    """Identity via an explicit Pallas copy kernel (direct HBM->HBM DMA).

    Design notes (from the perf review):
      * No VMEM staging: in/out use ``pl.BlockSpec(memory_space=pl.ANY)`` and
        the kernel issues a ring of up to 4 in-flight ``make_async_copy``
        chunks.  No vst slot pressure, no double-buffered VMEM, no vmem_limit
        override needed, no per-grid-step overhead.
      * ~8 MiB chunks by default (DMA descriptors are cheap; multiple in-flight
        chunks keep the DMA queues busy on all of v5e/v6e/v7x).
      * Tile-unaligned sizes (n % 128 != 0) are copied with one whole-tensor
        DMA in the original shape — no jnp.pad / out[:n] full-tensor round
        trips.
      * ``in_place=True`` adds ``input_output_aliases={0: 0}``.  Only enable it
        when the caller actually donates ``x``; otherwise XLA inserts a
        defensive copy of the input and you silently pay an extra full-tensor
        HBM round trip.
    """
    if x.size == 0:
        return x

    orig_shape = x.shape
    dtype = x.dtype
    n = x.size
    itemsize = jnp.dtype(dtype).itemsize
    aliases = {0: 0} if in_place else {}

    if n % _LANES != 0:
        # Rare fallback: one whole-tensor DMA, original shape, no pad/slice.
        # TODO(synk): chunk the unaligned path too if it ever shows up hot.
        return pl.pallas_call(
            _whole_copy_kernel,
            out_shape=jax.ShapeDtypeStruct(orig_shape, dtype),
            in_specs=[pl.BlockSpec(memory_space=pl.ANY)],
            out_specs=pl.BlockSpec(memory_space=pl.ANY),
            scratch_shapes=[pltpu.SemaphoreType.DMA((1,))],
            input_output_aliases=aliases,
        )(x)

    # Lane-dense slab; the reshape of a contiguous row-major array is free.
    rows = n // _LANES
    row_bytes = _LANES * itemsize
    chunk_rows = max(1, min(rows, target_chunk_bytes // row_bytes))
    num_full = rows // chunk_rows
    rem = rows - num_full * chunk_rows
    depth = min(_DMA_RING, num_full)

    kernel = _make_ring_copy_kernel(chunk_rows, num_full, rem, depth)
    x2d = x.reshape(rows, _LANES)

    out2d = pl.pallas_call(
        kernel,
        out_shape=jax.ShapeDtypeStruct((rows, _LANES), dtype),
        in_specs=[pl.BlockSpec(memory_space=pl.ANY)],
        out_specs=pl.BlockSpec(memory_space=pl.ANY),
        scratch_shapes=[pltpu.SemaphoreType.DMA((depth,))],
        input_output_aliases=aliases,
    )(x2d)
    return out2d.reshape(orig_shape)


if __name__ == "__main__":
    import numpy as np

    key = jax.random.PRNGKey(0)
    x = jax.random.normal(key, (2, 4, 16, 16), dtype=jnp.float32)  # NCHW
    x_host = np.asarray(x)

    # Fast path: the module's forward is `return x` -- no copy at all.
    assert identity(x) is x

    # Pallas HBM->HBM DMA path.  Use a tiny chunk size so this small test
    # tensor still exercises the full prime / ring / tail structure
    # (rows=16, chunk_rows=3 -> 5 full chunks + 1 tail row).
    run_small_chunks = jax.jit(functools.partial(identity_pallas, target_chunk_bytes=1536))
    y = run_small_chunks(x)
    jax.block_until_ready(y)
    assert y.shape == x_host.shape and y.dtype == jnp.float32
    assert np.array_equal(np.asarray(y), x_host)

    # Default chunking (degenerates to a single DMA for this size).
    y2 = jax.jit(identity_pallas)(x)
    jax.block_until_ready(y2)
    assert np.array_equal(np.asarray(y2), x_host)

    # Tile-unaligned fallback path (whole-tensor DMA, no pad / slice).
    z = jax.random.normal(jax.random.PRNGKey(1), (3, 5, 7), dtype=jnp.float32)
    z_host = np.asarray(z)
    z_out = jax.jit(identity_pallas)(z)
    jax.block_until_ready(z_out)
    assert z_out.shape == z_host.shape
    assert np.array_equal(np.asarray(z_out), z_host)

    print("KERNEL_OK")
</pallas_src>

<mosaic_0001>
module attributes {stable_mosaic.version = 11 : i64} {
  func.func @kernel(%arg0: memref<16x128xf32, #tpu.memory_space<any>>, %arg1: memref<16x128xf32, #tpu.memory_space<any>>, %arg2: memref<4x!tpu.dma_semaphore, #tpu.memory_space<semaphore_mem>>) attributes {dimension_semantics = [], scalar_prefetch = 0 : i64, scratch_operands = 1 : i64, tpu.core_type = #tpu.core_type<tc>} {
    %c0_i32 = arith.constant 0 : i32
    %c0_i32_0 = arith.constant 0 : i32
    %c0_i32_1 = arith.constant 0 : i32
    %0 = tpu.memref_slice %arg0[%c0_i32_0, %c0_i32_1] : memref<16x128xf32, #tpu.memory_space<any>> -> memref<3x128xf32, #tpu.memory_space<any>>
    %c0_i32_2 = arith.constant 0 : i32
    %c0_i32_3 = arith.constant 0 : i32
    %1 = tpu.memref_slice %arg1[%c0_i32_2, %c0_i32_3] : memref<16x128xf32, #tpu.memory_space<any>> -> memref<3x128xf32, #tpu.memory_space<any>>
    %2 = tpu.memref_slice %arg2[%c0_i32] : memref<4x!tpu.dma_semaphore, #tpu.memory_space<semaphore_mem>> -> memref<1x!tpu.dma_semaphore, #tpu.memory_space<semaphore_mem>>
    %3 = tpu.memref_squeeze %2 : memref<1x!tpu.dma_semaphore, #tpu.memory_space<semaphore_mem>> -> memref<!tpu.dma_semaphore, #tpu.memory_space<semaphore_mem>>
    tpu.enqueue_dma source(%0 : memref<3x128xf32, #tpu.memory_space<any>>) target(%1 : memref<3x128xf32, #tpu.memory_space<any>>) target_semaphore(%3 : memref<!tpu.dma_semaphore, #tpu.memory_space<semaphore_mem>>)
    %c1_i32 = arith.constant 1 : i32
    %c3_i32 = arith.constant 3 : i32
    %c0_i32_4 = arith.constant 0 : i32
    %4 = tpu.memref_slice %arg0[%c3_i32, %c0_i32_4] : memref<16x128xf32, #tpu.memory_space<any>> -> memref<3x128xf32, #tpu.memory_space<any>>
    %c3_i32_5 = arith.constant 3 : i32
    %c0_i32_6 = arith.constant 0 : i32
    %5 = tpu.memref_slice %arg1[%c3_i32_5, %c0_i32_6] : memref<16x128xf32, #tpu.memory_space<any>> -> memref<3x128xf32, #tpu.memory_space<any>>
    %6 = tpu.memref_slice %arg2[%c1_i32] : memref<4x!tpu.dma_semaphore, #tpu.memory_space<semaphore_mem>> -> memref<1x!tpu.dma_semaphore, #tpu.memory_space<semaphore_mem>>
    %7 = tpu.memref_squeeze %6 : memref<1x!tpu.dma_semaphore, #tpu.memory_space<semaphore_mem>> -> memref<!tpu.dma_semaphore, #tpu.memory_space<semaphore_mem>>
    tpu.enqueue_dma source(%4 : memref<3x128xf32, #tpu.memory_space<any>>) target(%5 : memref<3x128xf32, #tpu.memory_space<any>>) target_semaphore(%7 : memref<!tpu.dma_semaphore, #tpu.memory_space<semaphore_mem>>)
    %c2_i32 = arith.constant 2 : i32
    %c6_i32 = arith.constant 6 : i32
    %c0_i32_7 = arith.constant 0 : i32
    %8 = tpu.memref_slice %arg0[%c6_i32, %c0_i32_7] : memref<16x128xf32, #tpu.memory_space<any>> -> memref<3x128xf32, #tpu.memory_space<any>>
    %c6_i32_8 = arith.constant 6 : i32
    %c0_i32_9 = arith.constant 0 : i32
    %9 = tpu.memref_slice %arg1[%c6_i32_8, %c0_i32_9] : memref<16x128xf32, #tpu.memory_space<any>> -> memref<3x128xf32, #tpu.memory_space<any>>
    %10 = tpu.memref_slice %arg2[%c2_i32] : memref<4x!tpu.dma_semaphore, #tpu.memory_space<semaphore_mem>> -> memref<1x!tpu.dma_semaphore, #tpu.memory_space<semaphore_mem>>
    %11 = tpu.memref_squeeze %10 : memref<1x!tpu.dma_semaphore, #tpu.memory_space<semaphore_mem>> -> memref<!tpu.dma_semaphore, #tpu.memory_space<semaphore_mem>>
    tpu.enqueue_dma source(%8 : memref<3x128xf32, #tpu.memory_space<any>>) target(%9 : memref<3x128xf32, #tpu.memory_space<any>>) target_semaphore(%11 : memref<!tpu.dma_semaphore, #tpu.memory_space<semaphore_mem>>)
    %c3_i32_10 = arith.constant 3 : i32
    %c9_i32 = arith.constant 9 : i32
    %c0_i32_11 = arith.constant 0 : i32
    %12 = tpu.memref_slice %arg0[%c9_i32, %c0_i32_11] : memref<16x128xf32, #tpu.memory_space<any>> -> memref<3x128xf32, #tpu.memory_space<any>>
    %c9_i32_12 = arith.constant 9 : i32
    %c0_i32_13 = arith.constant 0 : i32
    %13 = tpu.memref_slice %arg1[%c9_i32_12, %c0_i32_13] : memref<16x128xf32, #tpu.memory_space<any>> -> memref<3x128xf32, #tpu.memory_space<any>>
    %14 = tpu.memref_slice %arg2[%c3_i32_10] : memref<4x!tpu.dma_semaphore, #tpu.memory_space<semaphore_mem>> -> memref<1x!tpu.dma_semaphore, #tpu.memory_space<semaphore_mem>>
    %15 = tpu.memref_squeeze %14 : memref<1x!tpu.dma_semaphore, #tpu.memory_space<semaphore_mem>> -> memref<!tpu.dma_semaphore, #tpu.memory_space<semaphore_mem>>
    tpu.enqueue_dma source(%12 : memref<3x128xf32, #tpu.memory_space<any>>) target(%13 : memref<3x128xf32, #tpu.memory_space<any>>) target_semaphore(%15 : memref<!tpu.dma_semaphore, #tpu.memory_space<semaphore_mem>>)
    %c0_i32_14 = arith.constant 0 : i32
    %c5_i32 = arith.constant 5 : i32
    %16 = arith.addi %c0_i32_14, %c5_i32 : i32
    %c1_i32_15 = arith.constant 1 : i32
    scf.for %arg3 = %c0_i32_14 to %16 step %c1_i32_15  : i32 {
      %c1_i32_26 = arith.constant 1 : i32
      %25 = arith.muli %arg3, %c1_i32_26 : i32
      %c0_i32_27 = arith.constant 0 : i32
      %26 = arith.addi %c0_i32_27, %25 : i32
      %c4_i32 = arith.constant 4 : i32
      %c0_i32_28 = arith.constant 0 : i32
      %27 = arith.cmpi eq, %c4_i32, %c0_i32_28 : i32
      %c1_i32_29 = arith.constant 1 : i32
      %28 = arith.select %27, %c1_i32_29, %c4_i32 : i32
      %29 = arith.remsi %26, %28 : i32
      %c0_i32_30 = arith.constant 0 : i32
      %30 = arith.cmpi ne, %29, %c0_i32_30 : i32
      %c0_i32_31 = arith.constant 0 : i32
      %31 = arith.cmpi slt, %29, %c0_i32_31 : i32
      %c0_i32_32 = arith.constant 0 : i32
      %32 = arith.cmpi slt, %28, %c0_i32_32 : i32
      %33 = arith.xori %31, %32 : i1
      %34 = arith.andi %33, %30 : i1
      %35 = arith.addi %29, %28 : i32
      %36 = arith.select %34, %35, %29 : i32
      %c3_i32_33 = arith.constant 3 : i32
      %37 = arith.muli %26, %c3_i32_33 : i32
      %c0_i32_34 = arith.constant 0 : i32
      %38 = tpu.memref_slice %arg0[%37, %c0_i32_34] : memref<16x128xf32, #tpu.memory_space<any>> -> memref<3x128xf32, #tpu.memory_space<any>>
      %c0_i32_35 = arith.constant 0 : i32
      %39 = tpu.memref_slice %arg1[%37, %c0_i32_35] : memref<16x128xf32, #tpu.memory_space<any>> -> memref<3x128xf32, #tpu.memory_space<any>>
      %40 = tpu.memref_slice %arg2[%36] : memref<4x!tpu.dma_semaphore, #tpu.memory_space<semaphore_mem>> -> memref<1x!tpu.dma_semaphore, #tpu.memory_space<semaphore_mem>>
      %41 = tpu.memref_squeeze %40 : memref<1x!tpu.dma_semaphore, #tpu.memory_space<semaphore_mem>> -> memref<!tpu.dma_semaphore, #tpu.memory_space<semaphore_mem>>
      tpu.wait_dma2 semaphore(%41 : memref<!tpu.dma_semaphore, #tpu.memory_space<semaphore_mem>>) src(%38 : memref<3x128xf32, #tpu.memory_space<any>>) dst(%39 : memref<3x128xf32, #tpu.memory_space<any>>)
      %c4_i32_36 = arith.constant 4 : i32
      %42 = arith.addi %26, %c4_i32_36 : i32
      %c5_i32_37 = arith.constant 5 : i32
      %43 = arith.cmpi slt, %42, %c5_i32_37 : i32
      %44 = arith.extui %43 : i1 to i32
      %c0_i32_38 = arith.constant 0 : i32
      %45 = arith.cmpi ne, %44, %c0_i32_38 : i32
      scf.if %45 {
        %c4_i32_39 = arith.constant 4 : i32
        %c0_i32_40 = arith.constant 0 : i32
        %46 = arith.cmpi eq, %c4_i32_39, %c0_i32_40 : i32
        %c1_i32_41 = arith.constant 1 : i32
        %47 = arith.select %46, %c1_i32_41, %c4_i32_39 : i32
        %48 = arith.remsi %42, %47 : i32
        %c0_i32_42 = arith.constant 0 : i32
        %49 = arith.cmpi ne, %48, %c0_i32_42 : i32
        %c0_i32_43 = arith.constant 0 : i32
        %50 = arith.cmpi slt, %48, %c0_i32_43 : i32
        %c0_i32_44 = arith.constant 0 : i32
        %51 = arith.cmpi slt, %47, %c0_i32_44 : i32
        %52 = arith.xori %50, %51 : i1
        %53 = arith.andi %52, %49 : i1
        %54 = arith.addi %48, %47 : i32
        %55 = arith.select %53, %54, %48 : i32
        %c3_i32_45 = arith.constant 3 : i32
        %56 = arith.muli %42, %c3_i32_45 : i32
        %c0_i32_46 = arith.constant 0 : i32
        %57 = tpu.memref_slice %arg0[%56, %c0_i32_46] : memref<16x128xf32, #tpu.memory_space<any>> -> memref<3x128xf32, #tpu.memory_space<any>>
        %c0_i32_47 = arith.constant 0 : i32
        %58 = tpu.memref_slice %arg1[%56, %c0_i32_47] : memref<16x128xf32, #tpu.memory_space<any>> -> memref<3x128xf32, #tpu.memory_space<any>>
        %59 = tpu.memref_slice %arg2[%55] : memref<4x!tpu.dma_semaphore, #tpu.memory_space<semaphore_mem>> -> memref<1x!tpu.dma_semaphore, #tpu.memory_space<semaphore_mem>>
        %60 = tpu.memref_squeeze %59 : memref<1x!tpu.dma_semaphore, #tpu.memory_space<semaphore_mem>> -> memref<!tpu.dma_semaphore, #tpu.memory_space<semaphore_mem>>
        tpu.enqueue_dma source(%57 : memref<3x128xf32, #tpu.memory_space<any>>) target(%58 : memref<3x128xf32, #tpu.memory_space<any>>) target_semaphore(%60 : memref<!tpu.dma_semaphore, #tpu.memory_space<semaphore_mem>>)
      } else {
      }
    }
    %c5_i32_16 = arith.constant 5 : i32
    %c0_i32_17 = arith.constant 0 : i32
    %c15_i32 = arith.constant 15 : i32
    %c0_i32_18 = arith.constant 0 : i32
    %17 = tpu.memref_slice %arg0[%c15_i32, %c0_i32_18] : memref<16x128xf32, #tpu.memory_space<any>> -> memref<1x128xf32, #tpu.memory_space<any>>
    %c15_i32_19 = arith.constant 15 : i32
    %c0_i32_20 = arith.constant 0 : i32
    %18 = tpu.memref_slice %arg1[%c15_i32_19, %c0_i32_20] : memref<16x128xf32, #tpu.memory_space<any>> -> memref<1x128xf32, #tpu.memory_space<any>>
    %19 = tpu.memref_slice %arg2[%c0_i32_17] : memref<4x!tpu.dma_semaphore, #tpu.memory_space<semaphore_mem>> -> memref<1x!tpu.dma_semaphore, #tpu.memory_space<semaphore_mem>>
    %20 = tpu.memref_squeeze %19 : memref<1x!tpu.dma_semaphore, #tpu.memory_space<semaphore_mem>> -> memref<!tpu.dma_semaphore, #tpu.memory_space<semaphore_mem>>
    tpu.enqueue_dma source(%17 : memref<1x128xf32, #tpu.memory_space<any>>) target(%18 : memref<1x128xf32, #tpu.memory_space<any>>) target_semaphore(%20 : memref<!tpu.dma_semaphore, #tpu.memory_space<semaphore_mem>>)
    %c0_i32_21 = arith.constant 0 : i32
    %c15_i32_22 = arith.constant 15 : i32
    %c0_i32_23 = arith.constant 0 : i32
    %21 = tpu.memref_slice %arg0[%c15_i32_22, %c0_i32_23] : memref<16x128xf32, #tpu.memory_space<any>> -> memref<1x128xf32, #tpu.memory_space<any>>
    %c15_i32_24 = arith.constant 15 : i32
    %c0_i32_25 = arith.constant 0 : i32
    %22 = tpu.memref_slice %arg1[%c15_i32_24, %c0_i32_25] : memref<16x128xf32, #tpu.memory_space<any>> -> memref<1x128xf32, #tpu.memory_space<any>>
    %23 = tpu.memref_slice %arg2[%c0_i32_21] : memref<4x!tpu.dma_semaphore, #tpu.memory_space<semaphore_mem>> -> memref<1x!tpu.dma_semaphore, #tpu.memory_space<semaphore_mem>>
    %24 = tpu.memref_squeeze %23 : memref<1x!tpu.dma_semaphore, #tpu.memory_space<semaphore_mem>> -> memref<!tpu.dma_semaphore, #tpu.memory_space<semaphore_mem>>
    tpu.wait_dma2 semaphore(%24 : memref<!tpu.dma_semaphore, #tpu.memory_space<semaphore_mem>>) src(%21 : memref<1x128xf32, #tpu.memory_space<any>>) dst(%22 : memref<1x128xf32, #tpu.memory_space<any>>)
    return
  }
}

</mosaic_0001>

<llo_original>
// kernel: identity_pallas.1
$region0: #{identity_pallas.1}
  #allocation0 [shape = 'u32[]', space=smem, size = 0x4, offset = 0x4, fixed_abs, tag = 'smem constant byte address 0x4 - core index']
  #allocation1 [shape = 'u32[72,128]{1,0:T(1,128)}', space=vmem, size = 0x9000, scoped, tag = 'internal scratch']
  #allocation2 [shape = 's32[4]{0}', space=sflag, size = 0x10, scoped, tag = 'scratch operand']
  #allocation3 [shape = 's32[]', space=sflag, size = 0x4, offset = 0, fixed_abs, tag = 'sflag constant byte address 0x0 - dummy sync flag']
  #allocation4 [shape = 's32[]', space=sflag, size = 0x4, offset = 0, fixed_abs, tag = 'sflag constant byte address 0x0 - dummy sync flag']
  #allocation5 [shape = 's32[]', space=sflag, size = 0x4, offset = 0, fixed_abs, tag = 'sflag constant byte address 0x0 - dummy sync flag']
  #allocation6 [shape = 's32[]', space=sflag, size = 0x4, offset = 0, fixed_abs, tag = 'sflag constant byte address 0x0 - dummy sync flag']
  #allocation7 [shape = 's32[]', space=sflag, size = 0x4, offset = 0, fixed_abs, tag = 'sflag constant byte address 0x0 - dummy sync flag']
  #allocation8 [shape = 's32[]', space=sflag, size = 0x4, offset = 0, fixed_abs, tag = 'sflag constant byte address 0x0 - dummy sync flag']
  %s0 = inlined_call_operand.vmem [shape: f32[16,128], index: 0, kind: input, shape index: {}]
  %s1 = inlined_call_operand.vmem [shape: f32[16,128], index: 1, kind: output, shape index: {}]
  %s2 = sld [smem:[#allocation0]]
  $region193: #{identity_pallas.1} parent=0
    _
  %s4 = ssub.s32 1, %s2
  %s5 = scalar_select 0, %s4, %s2
  // Predicated region
  $region2: #{identity_pallas.1} parent=0 // pred_check
    _
  $region3: #{identity_pallas.1} parent=0 // pred_check_branch
    %7 = sbr.rel target = $region5
  $region4: #{identity_pallas.1} parent=0 // pred_region
    // Predicated region
    $region17: #{identity_pallas.1} parent=4 // pred_check
      _
    $region18: #{identity_pallas.1} parent=4 // pred_check_branch
      %23 = sbr.rel (0) target = $region20
    $region19: #{identity_pallas.1} parent=4 // pred_region
      %s25 = ssub.s32 8, 1
      loop: start=0, step=1, limit=1
      $region21: #{identity_pallas.1} parent=19 // loop_pre_header
        _
      $region22: #{identity_pallas.1} parent=19 // loop_header
        %s27 = sphi 0, %s31
        %p28 = scmp.ge.s32.totalorder %s27, 1
        %s32 = sphi %s0, %s0
        %s33 = sphi %s1, %s1
      $region23: #{identity_pallas.1} parent=19 // loop_header_branch
        %30 = sbr.rel (%p28) target = $region27
      $region24: #{identity_pallas.1} parent=19 // loop_body
        %v34 = vld [vmem:[%s32] sm:%s25]
        %35 = vst [vmem:[%s33] sm:%s25] %v34
      $region25: #{identity_pallas.1} parent=19 // loop_footer
        %s31 = sadd.s32 1, %s27
      $region26: #{identity_pallas.1} parent=19 // loop_footer_branch
        %26 = sbr.rel target = $region22
      $region27: #{identity_pallas.1} parent=19 // loop_exit
        _
    $region20: #{identity_pallas.1} parent=4 // pred_fallthru
      _
  $region5: #{identity_pallas.1} parent=0 // pred_fallthru
    _
  // Predicated region
  $region6: #{identity_pallas.1} parent=0 // pred_check
    _
  $region7: #{identity_pallas.1} parent=0 // pred_check_branch
    %9 = sbr.rel (0) target = $region9
  $region8: #{identity_pallas.1} parent=0 // pred_region
    %s11 = ssub.s32 8, 1
    loop: start=0, step=1, limit=1
    $region10: #{identity_pallas.1} parent=8 // loop_pre_header
      _
    $region11: #{identity_pallas.1} parent=8 // loop_header
      %s13 = sphi 0, %s17
      %p14 = scmp.ge.s32.totalorder %s13, 1
      %s18 = sphi %s0, %s0
      %s19 = sphi %s1, %s1
    $region12: #{identity_pallas.1} parent=8 // loop_header_branch
      %16 = sbr.rel (%p14) target = $region16
    $region13: #{identity_pallas.1} parent=8 // loop_body
      %v20 = vld [vmem:[%s18] sm:%s11]
      %21 = vst [vmem:[%s19] sm:%s11] %v20
    $region14: #{identity_pallas.1} parent=8 // loop_footer
      %s17 = sadd.s32 1, %s13
    $region15: #{identity_pallas.1} parent=8 // loop_footer_branch
      %12 = sbr.rel target = $region11
    $region16: #{identity_pallas.1} parent=8 // loop_exit
      _
  $region9: #{identity_pallas.1} parent=0 // pred_fallthru
    _
  // Predicated region
  $region28: #{identity_pallas.1} parent=0 // pred_check
    _
  $region29: #{identity_pallas.1} parent=0 // pred_check_branch
    %38 = sbr.rel (0) target = $region31
  $region30: #{identity_pallas.1} parent=0 // pred_region
    %39 = vsyncadd [#allocation2], 48
  $region31: #{identity_pallas.1} parent=0 // pred_fallthru
    _
  %s40 = scalar_lea.vmem %s0, 3
  %s41 = scalar_lea.vmem %s1, 3
  %s42 = scalar_lea.sflag [#allocation2], 1
  // Predicated region
  $region32: #{identity_pallas.1} parent=0 // pred_check
    _
  $region33: #{identity_pallas.1} parent=0 // pred_check_branch
    %44 = sbr.rel target = $region35
  $region34: #{identity_pallas.1} parent=0 // pred_region
    // Predicated region
    $region47: #{identity_pallas.1} parent=34 // pred_check
      _
    $region48: #{identity_pallas.1} parent=34 // pred_check_branch
      %60 = sbr.rel (0) target = $region50
    $region49: #{identity_pallas.1} parent=34 // pred_region
      %s62 = ssub.s32 8, 1
      loop: start=0, step=1, limit=1
      $region51: #{identity_pallas.1} parent=49 // loop_pre_header
        _
      $region52: #{identity_pallas.1} parent=49 // loop_header
        %s64 = sphi 0, %s68
        %p65 = scmp.ge.s32.totalorder %s64, 1
        %s69 = sphi %s40, %s40
        %s70 = sphi %s41, %s41
      $region53: #{identity_pallas.1} parent=49 // loop_header_branch
        %67 = sbr.rel (%p65) target = $region57
      $region54: #{identity_pallas.1} parent=49 // loop_body
        %v71 = vld [vmem:[%s69] sm:%s62]
        %72 = vst [vmem:[%s70] sm:%s62] %v71
      $region55: #{identity_pallas.1} parent=49 // loop_footer
        %s68 = sadd.s32 1, %s64
      $region56: #{identity_pallas.1} parent=49 // loop_footer_branch
        %63 = sbr.rel target = $region52
      $region57: #{identity_pallas.1} parent=49 // loop_exit
        _
    $region50: #{identity_pallas.1} parent=34 // pred_fallthru
      _
  $region35: #{identity_pallas.1} parent=0 // pred_fallthru
    _
  // Predicated region
  $region36: #{identity_pallas.1} parent=0 // pred_check
    _
  $region37: #{identity_pallas.1} parent=0 // pred_check_branch
    %46 = sbr.rel (0) target = $region39
  $region38: #{identity_pallas.1} parent=0 // pred_region
    %s48 = ssub.s32 8, 1
    loop: start=0, step=1, limit=1
    $region40: #{identity_pallas.1} parent=38 // loop_pre_header
      _
    $region41: #{identity_pallas.1} parent=38 // loop_header
      %s50 = sphi 0, %s54
      %p51 = scmp.ge.s32.totalorder %s50, 1
      %s55 = sphi %s40, %s40
      %s56 = sphi %s41, %s41
    $region42: #{identity_pallas.1} parent=38 // loop_header_branch
      %53 = sbr.rel (%p51) target = $region46
    $region43: #{identity_pallas.1} parent=38 // loop_body
      %v57 = vld [vmem:[%s55] sm:%s48]
      %58 = vst [vmem:[%s56] sm:%s48] %v57
    $region44: #{identity_pallas.1} parent=38 // loop_footer
      %s54 = sadd.s32 1, %s50
    $region45: #{identity_pallas.1} parent=38 // loop_footer_branch
      %49 = sbr.rel target = $region41
    $region46: #{identity_pallas.1} parent=38 // loop_exit
      _
  $region39: #{identity_pallas.1} parent=0 // pred_fallthru
    _
  // Predicated region
  $region58: #{identity_pallas.1} parent=0 // pred_check
    _
  $region59: #{identity_pallas.1} parent=0 // pred_check_branch
    %75 = sbr.rel (0) target = $region61
  $region60: #{identity_pallas.1} parent=0 // pred_region
    %76 = vsyncadd %s42, 48
  $region61: #{identity_pallas.1} parent=0 // pred_fallthru
    _
  %s77 = scalar_lea.vmem %s0, 6
  %s78 = scalar_lea.vmem %s1, 6
  %s79 = scalar_lea.sflag [#allocation2], 2
  // Predicated region
  $region62: #{identity_pallas.1} parent=0 // pred_check
    _
  $region63: #{identity_pallas.1} parent=0 // pred_check_branch
    %81 = sbr.rel target = $region65
  $region64: #{identity_pallas.1} parent=0 // pred_region
    // Predicated region
    $region77: #{identity_pallas.1} parent=64 // pred_check
      _
    $region78: #{identity_pallas.1} parent=64 // pred_check_branch
      %97 = sbr.rel (0) target = $region80
    $region79: #{identity_pallas.1} parent=64 // pred_region
      %s99 = ssub.s32 8, 1
      loop: start=0, step=1, limit=1
      $region81: #{identity_pallas.1} parent=79 // loop_pre_header
        _
      $region82: #{identity_pallas.1} parent=79 // loop_header
        %s101 = sphi 0, %s105
        %p102 = scmp.ge.s32.totalorder %s101, 1
        %s106 = sphi %s77, %s77
        %s107 = sphi %s78, %s78
      $region83: #{identity_pallas.1} parent=79 // loop_header_branch
        %104 = sbr.rel (%p102) target = $region87
      $region84: #{identity_pallas.1} parent=79 // loop_body
        %v108 = vld [vmem:[%s106] sm:%s99]
        %109 = vst [vmem:[%s107] sm:%s99] %v108
      $region85: #{identity_pallas.1} parent=79 // loop_footer
        %s105 = sadd.s32 1, %s101
      $region86: #{identity_pallas.1} parent=79 // loop_footer_branch
        %100 = sbr.rel target = $region82
      $region87: #{identity_pallas.1} parent=79 // loop_exit
        _
    $region80: #{identity_pallas.1} parent=64 // pred_fallthru
      _
  $region65: #{identity_pallas.1} parent=0 // pred_fallthru
    _
  // Predicated region
  $region66: #{identity_pallas.1} parent=0 // pred_check
    _
  $region67: #{identity_pallas.1} parent=0 // pred_check_branch
    %83 = sbr.rel (0) target = $region69
  $region68: #{identity_pallas.1} parent=0 // pred_region
    %s85 = ssub.s32 8, 1
    loop: start=0, step=1, limit=1
    $region70: #{identity_pallas.1} parent=68 // loop_pre_header
      _
    $region71: #{identity_pallas.1} parent=68 // loop_header
      %s87 = sphi 0, %s91
      %p88 = scmp.ge.s32.totalorder %s87, 1
      %s92 = sphi %s77, %s77
      %s93 = sphi %s78, %s78
    $region72: #{identity_pallas.1} parent=68 // loop_header_branch
      %90 = sbr.rel (%p88) target = $region76
    $region73: #{identity_pallas.1} parent=68 // loop_body
      %v94 = vld [vmem:[%s92] sm:%s85]
      %95 = vst [vmem:[%s93] sm:%s85] %v94
    $region74: #{identity_pallas.1} parent=68 // loop_footer
      %s91 = sadd.s32 1, %s87
    $region75: #{identity_pallas.1} parent=68 // loop_footer_branch
      %86 = sbr.rel target = $region71
    $region76: #{identity_pallas.1} parent=68 // loop_exit
      _
  $region69: #{identity_pallas.1} parent=0 // pred_fallthru
    _
  // Predicated region
  $region88: #{identity_pallas.1} parent=0 // pred_check
    _
  $region89: #{identity_pallas.1} parent=0 // pred_check_branch
    %112 = sbr.rel (0) target = $region91
  $region90: #{identity_pallas.1} parent=0 // pred_region
    %113 = vsyncadd %s79, 48
  $region91: #{identity_pallas.1} parent=0 // pred_fallthru
    _
  %s114 = scalar_lea.vmem %s0, 9
  %s115 = scalar_lea.vmem %s1, 9
  %s116 = scalar_lea.sflag [#allocation2], 3
  // Predicated region
  $region92: #{identity_pallas.1} parent=0 // pred_check
    _
  $region93: #{identity_pallas.1} parent=0 // pred_check_branch
    %118 = sbr.rel target = $region95
  $region94: #{identity_pallas.1} parent=0 // pred_region
    // Predicated region
    $region107: #{identity_pallas.1} parent=94 // pred_check
      _
    $region108: #{identity_pallas.1} parent=94 // pred_check_branch
      %134 = sbr.rel (0) target = $region110
    $region109: #{identity_pallas.1} parent=94 // pred_region
      %s136 = ssub.s32 8, 1
      loop: start=0, step=1, limit=1
      $region111: #{identity_pallas.1} parent=109 // loop_pre_header
        _
      $region112: #{identity_pallas.1} parent=109 // loop_header
        %s138 = sphi 0, %s142
        %p139 = scmp.ge.s32.totalorder %s138, 1
        %s143 = sphi %s114, %s114
        %s144 = sphi %s115, %s115
      $region113: #{identity_pallas.1} parent=109 // loop_header_branch
        %141 = sbr.rel (%p139) target = $region117
      $region114: #{identity_pallas.1} parent=109 // loop_body
        %v145 = vld [vmem:[%s143] sm:%s136]
        %146 = vst [vmem:[%s144] sm:%s136] %v145
      $region115: #{identity_pallas.1} parent=109 // loop_footer
        %s142 = sadd.s32 1, %s138
      $region116: #{identity_pallas.1} parent=109 // loop_footer_branch
        %137 = sbr.rel target = $region112
      $region117: #{identity_pallas.1} parent=109 // loop_exit
        _
    $region110: #{identity_pallas.1} parent=94 // pred_fallthru
      _
  $region95: #{identity_pallas.1} parent=0 // pred_fallthru
    _
  // Predicated region
  $region96: #{identity_pallas.1} parent=0 // pred_check
    _
  $region97: #{identity_pallas.1} parent=0 // pred_check_branch
    %120 = sbr.rel (0) target = $region99
  $region98: #{identity_pallas.1} parent=0 // pred_region
    %s122 = ssub.s32 8, 1
    loop: start=0, step=1, limit=1
    $region100: #{identity_pallas.1} parent=98 // loop_pre_header
      _
    $region101: #{identity_pallas.1} parent=98 // loop_header
      %s124 = sphi 0, %s128
      %p125 = scmp.ge.s32.totalorder %s124, 1
      %s129 = sphi %s114, %s114
      %s130 = sphi %s115, %s115
    $region102: #{identity_pallas.1} parent=98 // loop_header_branch
      %127 = sbr.rel (%p125) target = $region106
    $region103: #{identity_pallas.1} parent=98 // loop_body
      %v131 = vld [vmem:[%s129] sm:%s122]
      %132 = vst [vmem:[%s130] sm:%s122] %v131
    $region104: #{identity_pallas.1} parent=98 // loop_footer
      %s128 = sadd.s32 1, %s124
    $region105: #{identity_pallas.1} parent=98 // loop_footer_branch
      %123 = sbr.rel target = $region101
    $region106: #{identity_pallas.1} parent=98 // loop_exit
      _
  $region99: #{identity_pallas.1} parent=0 // pred_fallthru
    _
  // Predicated region
  $region118: #{identity_pallas.1} parent=0 // pred_check
    _
  $region119: #{identity_pallas.1} parent=0 // pred_check_branch
    %149 = sbr.rel (0) target = $region121
  $region120: #{identity_pallas.1} parent=0 // pred_region
    %150 = vsyncadd %s116, 48
  $region121: #{identity_pallas.1} parent=0 // pred_fallthru
    _
  loop: start=0, step=1, limit=5
  $region122: #{identity_pallas.1} parent=0 // loop_pre_header
    _
  $region123: #{identity_pallas.1} parent=0 // loop_header
    %s152 = sphi 0, %s156
    %p153 = scmp.ge.s32.totalorder %s152, 5
  $region124: #{identity_pallas.1} parent=0 // loop_header_branch
    %155 = sbr.rel (%p153) target = $region128
  $region125: #{identity_pallas.1} parent=0 // loop_body
    %p157 = scmp.lt.s32.totalorder %s152, 0
    %s158 = ssub.s32 0, %s152
    %s159 = scalar_select %p157, %s158, %s152
    %s160 = sand.u32 %s159, 3
    %s161 = ssub.s32 0, %s160
    %s162 = scalar_select %p157, %s161, %s160
    %p163 = scmp.ne.s32.totalorder %s162, 0
    %p164 = scmp.lt.s32.totalorder %s162, 0
    %p165 = pnand %p164, %p163
    %p166 = pneg %p165
    %s167 = sadd.s32 %s162, 4
    %s168 = scalar_select %p166, %s167, %s162
    %s169 = scalar_lea.sflag [#allocation2], %s168
    %s170 = smul.u32 3, 1
    %s171 = sshll.u32 %s170, 4
    %172 = dma.done %s169, %s171
    %s173 = sadd.s32 %s152, 4
    %p174 = scmp.lt.s32.totalorder %s173, 5
    // Predicated region
    $region129: #{identity_pallas.1} parent=125 // pred_check
      %p175 = pneg %p174
    $region130: #{identity_pallas.1} parent=125 // pred_check_branch
      %177 = sbr.rel (%p175) target = $region132
    $region131: #{identity_pallas.1} parent=125 // pred_region
      %p178 = scmp.lt.s32.totalorder %s173, 0
      %s179 = ssub.s32 0, %s173
      %s180 = scalar_select %p178, %s179, %s173
      %s181 = sand.u32 %s180, 3
      %s182 = ssub.s32 0, %s181
      %s183 = scalar_select %p178, %s182, %s181
      %p184 = scmp.ne.s32.totalorder %s183, 0
      %p185 = scmp.lt.s32.totalorder %s183, 0
      %p186 = pnand %p185, %p184
      %p187 = pneg %p186
      %s188 = sadd.s32 %s183, 4
      %s189 = scalar_select %p187, %s188, %s183
      %s190 = smul.u32 %s173, 3
      %s191 = scalar_lea.vmem %s0, %s190
      %s192 = scalar_lea.vmem %s1, %s190
      %s193 = scalar_lea.sflag [#allocation2], %s189
      // Predicated region
      $region133: #{identity_pallas.1} parent=131 // pred_check
        _
      $region134: #{identity_pallas.1} parent=131 // pred_check_branch
        %195 = sbr.rel target = $region136
      $region135: #{identity_pallas.1} parent=131 // pred_region
        // Predicated region
        $region148: #{identity_pallas.1} parent=135 // pred_check
          _
        $region149: #{identity_pallas.1} parent=135 // pred_check_branch
          %211 = sbr.rel (0) target = $region151
        $region150: #{identity_pallas.1} parent=135 // pred_region
          %s213 = ssub.s32 8, 1
          loop: start=0, step=1, limit=1
          $region152: #{identity_pallas.1} parent=150 // loop_pre_header
            _
          $region153: #{identity_pallas.1} parent=150 // loop_header
            %s215 = sphi 0, %s219
            %p216 = scmp.ge.s32.totalorder %s215, 1
            %s220 = sphi %s191, %s191
            %s221 = sphi %s192, %s192
          $region154: #{identity_pallas.1} parent=150 // loop_header_branch
            %218 = sbr.rel (%p216) target = $region158
          $region155: #{identity_pallas.1} parent=150 // loop_body
            %v222 = vld [vmem:[%s220] sm:%s213]
            %223 = vst [vmem:[%s221] sm:%s213] %v222
          $region156: #{identity_pallas.1} parent=150 // loop_footer
            %s219 = sadd.s32 1, %s215
          $region157: #{identity_pallas.1} parent=150 // loop_footer_branch
            %214 = sbr.rel target = $region153
          $region158: #{identity_pallas.1} parent=150 // loop_exit
            _
        $region151: #{identity_pallas.1} parent=135 // pred_fallthru
          _
      $region136: #{identity_pallas.1} parent=131 // pred_fallthru
        _
      // Predicated region
      $region137: #{identity_pallas.1} parent=131 // pred_check
        _
      $region138: #{identity_pallas.1} parent=131 // pred_check_branch
        %197 = sbr.rel (0) target = $region140
      $region139: #{identity_pallas.1} parent=131 // pred_region
        %s199 = ssub.s32 8, 1
        loop: start=0, step=1, limit=1
        $region141: #{identity_pallas.1} parent=139 // loop_pre_header
          _
        $region142: #{identity_pallas.1} parent=139 // loop_header
          %s201 = sphi 0, %s205
          %p202 = scmp.ge.s32.totalorder %s201, 1
          %s206 = sphi %s191, %s191
          %s207 = sphi %s192, %s192
        $region143: #{identity_pallas.1} parent=139 // loop_header_branch
          %204 = sbr.rel (%p202) target = $region147
        $region144: #{identity_pallas.1} parent=139 // loop_body
          %v208 = vld [vmem:[%s206] sm:%s199]
          %209 = vst [vmem:[%s207] sm:%s199] %v208
        $region145: #{identity_pallas.1} parent=139 // loop_footer
          %s205 = sadd.s32 1, %s201
        $region146: #{identity_pallas.1} parent=139 // loop_footer_branch
          %200 = sbr.rel target = $region142
        $region147: #{identity_pallas.1} parent=139 // loop_exit
          _
      $region140: #{identity_pallas.1} parent=131 // pred_fallthru
        _
      // Predicated region
      $region159: #{identity_pallas.1} parent=131 // pred_check
        _
      $region160: #{identity_pallas.1} parent=131 // pred_check_branch
        %226 = sbr.rel (0) target = $region162
      $region161: #{identity_pallas.1} parent=131 // pred_region
        %227 = vsyncadd %s193, 48
      $region162: #{identity_pallas.1} parent=131 // pred_fallthru
        _
    $region132: #{identity_pallas.1} parent=125 // pred_fallthru
      _
  $region126: #{identity_pallas.1} parent=0 // loop_footer
    %s156 = sadd.s32 1, %s152
  $region127: #{identity_pallas.1} parent=0 // loop_footer_branch
    %151 = sbr.rel target = $region123
  $region128: #{identity_pallas.1} parent=0 // loop_exit
    _
  %s228 = scalar_lea.vmem %s0, 15
  %s229 = scalar_lea.vmem %s1, 15
  // Predicated region
  $region163: #{identity_pallas.1} parent=0 // pred_check
    _
  $region164: #{identity_pallas.1} parent=0 // pred_check_branch
    %231 = sbr.rel target = $region166
  $region165: #{identity_pallas.1} parent=0 // pred_region
    // Predicated region
    $region178: #{identity_pallas.1} parent=165 // pred_check
      _
    $region179: #{identity_pallas.1} parent=165 // pred_check_branch
      %247 = sbr.rel (0) target = $region181
    $region180: #{identity_pallas.1} parent=165 // pred_region
      %s249 = ssub.s32 2, 1
      loop: start=0, step=1, limit=1
      $region182: #{identity_pallas.1} parent=180 // loop_pre_header
        _
      $region183: #{identity_pallas.1} parent=180 // loop_header
        %s251 = sphi 0, %s255
        %p252 = scmp.ge.s32.totalorder %s251, 1
        %s256 = sphi %s228, %s228
        %s257 = sphi %s229, %s229
      $region184: #{identity_pallas.1} parent=180 // loop_header_branch
        %254 = sbr.rel (%p252) target = $region188
      $region185: #{identity_pallas.1} parent=180 // loop_body
        %v258 = vld [vmem:[%s256] sm:%s249]
        %259 = vst [vmem:[%s257] sm:%s249] %v258
      $region186: #{identity_pallas.1} parent=180 // loop_footer
        %s255 = sadd.s32 1, %s251
      $region187: #{identity_pallas.1} parent=180 // loop_footer_branch
        %250 = sbr.rel target = $region183
      $region188: #{identity_pallas.1} parent=180 // loop_exit
        _
    $region181: #{identity_pallas.1} parent=165 // pred_fallthru
      _
  $region166: #{identity_pallas.1} parent=0 // pred_fallthru
    _
  // Predicated region
  $region167: #{identity_pallas.1} parent=0 // pred_check
    _
  $region168: #{identity_pallas.1} parent=0 // pred_check_branch
    %233 = sbr.rel (0) target = $region170
  $region169: #{identity_pallas.1} parent=0 // pred_region
    %s235 = ssub.s32 2, 1
    loop: start=0, step=1, limit=1
    $region171: #{identity_pallas.1} parent=169 // loop_pre_header
      _
    $region172: #{identity_pallas.1} parent=169 // loop_header
      %s237 = sphi 0, %s241
      %p238 = scmp.ge.s32.totalorder %s237, 1
      %s242 = sphi %s228, %s228
      %s243 = sphi %s229, %s229
    $region173: #{identity_pallas.1} parent=169 // loop_header_branch
      %240 = sbr.rel (%p238) target = $region177
    $region174: #{identity_pallas.1} parent=169 // loop_body
      %v244 = vld [vmem:[%s242] sm:%s235]
      %245 = vst [vmem:[%s243] sm:%s235] %v244
    $region175: #{identity_pallas.1} parent=169 // loop_footer
      %s241 = sadd.s32 1, %s237
    $region176: #{identity_pallas.1} parent=169 // loop_footer_branch
      %236 = sbr.rel target = $region172
    $region177: #{identity_pallas.1} parent=169 // loop_exit
      _
  $region170: #{identity_pallas.1} parent=0 // pred_fallthru
    _
  // Predicated region
  $region189: #{identity_pallas.1} parent=0 // pred_check
    _
  $region190: #{identity_pallas.1} parent=0 // pred_check_branch
    %262 = sbr.rel (0) target = $region192
  $region191: #{identity_pallas.1} parent=0 // pred_region
    %263 = vsyncadd [#allocation2], 16
  $region192: #{identity_pallas.1} parent=0 // pred_fallthru
    _
  %s264 = smul.u32 1, 1
  %s265 = sshll.u32 %s264, 4
  %266 = dma.done [#allocation2], %s265
  %267 = vsyncmov [#allocation2]
  %s268 = vpop.sfrf %267
  %p269 = scmp.eq.s32.totalorder %s268, 0
  %p270 = pneg %p269
  %272 = shalt.err (%p270)
  %s273 = scalar_lea.sflag [#allocation2], 1
  %274 = vsyncmov %s273
  %s275 = vpop.sfrf %274
  %p276 = scmp.eq.s32.totalorder %s275, 0
  %p277 = pneg %p276
  %279 = shalt.err (%p277)
  %s280 = scalar_lea.sflag [#allocation2], 2
  %281 = vsyncmov %s280
  %s282 = vpop.sfrf %281
  %p283 = scmp.eq.s32.totalorder %s282, 0
  %p284 = pneg %p283
  %286 = shalt.err (%p284)
  %s287 = scalar_lea.sflag [#allocation2], 3
  %288 = vsyncmov %s287
  %s289 = vpop.sfrf %288
  %p290 = scmp.eq.s32.totalorder %s289, 0
  %p291 = pneg %p290
  %293 = shalt.err (%p291)

</llo_original>
